<compile_context>
chip_gen: v7x
topology: tpu7x:2x2x1
jax: 0.10.0
libtpu: 0.0.40
codegen_flags: <defaults>
</compile_context>

<pallas_src>
import functools

import jax
import jax.numpy as jnp
from jax.experimental import pallas as pl
from jax.experimental.pallas import tpu as pltpu


def _rup(a, b):
    return (a + b - 1) // b * b


# --------------------------------------------------------------------------
# Pallas kernels
# --------------------------------------------------------------------------

def _mm_kernel(x_ref, w_ref, b_ref, o_ref, acc_ref, *, act):
    """Tiled matmul with K-accumulation, fused bias + activation (bf16 MXU)."""
    @pl.when(pl.program_id(2) == 0)
    def _():
        acc_ref[...] = jnp.zeros_like(acc_ref)

    acc_ref[...] += jnp.dot(x_ref[...], w_ref[...],
                            preferred_element_type=jnp.float32)

    @pl.when(pl.program_id(2) == pl.num_programs(2) - 1)
    def _():
        r = acc_ref[...] + b_ref[...]
        if act == "relu":
            r = jnp.maximum(r, 0.0)
        elif act == "sigmoid":
            r = jax.nn.sigmoid(r)
        elif act == "abs":
            r = jnp.abs(r)
        o_ref[...] = r.astype(o_ref.dtype)


def _dconv_kernel(x_ref, w_ref, b_ref, o_ref, acc_ref, *, W, KH, KW, dil,
                  tbh, act):
    """Direct 3x3 conv: accumulate KH*KW tap matmuls, no im2col tensor.

    x_ref: (1, KW, Hp*W, Cin) bf16 (KW width-shifted, row-flattened copies)
    w_ref: (KH*KW, Cin, tn) bf16;  b_ref: (1, tn) f32
    o_ref: (1, tbh*W, tn);  acc_ref: (tbh*W, tn) f32 scratch
    """
    i = pl.program_id(1)
    acc_ref[...] = jnp.zeros_like(acc_ref)
    for ky in range(KH):
        start = pl.multiple_of((i * tbh + ky * dil) * W, 8)
        for kx in range(KW):
            xs = x_ref[0, kx, pl.ds(start, tbh * W), :]       # (tbh*W, Cin)
            acc_ref[...] += jnp.dot(xs, w_ref[ky * KW + kx],
                                    preferred_element_type=jnp.float32)
    r = acc_ref[...] + b_ref[...]
    if act == "relu":
        r = jnp.maximum(r, 0.0)
    elif act == "sigmoid":
        r = jax.nn.sigmoid(r)
    elif act == "abs":
        r = jnp.abs(r)
    o_ref[0] = r.astype(o_ref.dtype)


def _max4_kernel(a_ref, b_ref, c_ref, d_ref, o_ref):
    o_ref[...] = jnp.maximum(jnp.maximum(a_ref[...], b_ref[...]),
                             jnp.maximum(c_ref[...], d_ref[...]))


def _chan_stats_kernel(x_ref, o_ref):
    """Per-pixel [max, mean] over channels, single 2-column output."""
    x = x_ref[...].astype(jnp.float32)
    mx = jnp.max(x, axis=-1, keepdims=True)
    mn = jnp.mean(x, axis=-1, keepdims=True)
    o_ref[...] = jnp.concatenate([mx, mn], axis=-1).astype(o_ref.dtype)


def _gpool_kernel(x_ref, mx_ref, av_ref, m_scr, s_scr, *, hw_total):
    """Global max/avg pool over H*W, accumulated across the innermost grid axis."""
    k = pl.program_id(2)

    @pl.when(k == 0)
    def _():
        m_scr[...] = jnp.full_like(m_scr, -jnp.inf)
        s_scr[...] = jnp.zeros_like(s_scr)

    x = x_ref[...].astype(jnp.float32)                     # (1, thw, tc)
    m_scr[...] = jnp.maximum(m_scr[...], jnp.max(x, axis=1, keepdims=True))
    s_scr[...] += jnp.sum(x, axis=1, keepdims=True)

    @pl.when(k == pl.num_programs(2) - 1)
    def _():
        mx_ref[...] = m_scr[...]
        av_ref[...] = s_scr[...] * (1.0 / hw_total)


def _sca_combine_kernel(x_ref, sa_ref, ca_ref, o_ref):
    x = x_ref[...].astype(jnp.float32)                     # (1, thw, C)
    sa = sa_ref[...].astype(jnp.float32)                   # (1, thw, 1)
    ca = ca_ref[...].astype(jnp.float32)                   # (1, 1, C)
    o_ref[...] = ((x * sa) * (x * ca) + x).astype(o_ref.dtype)


# --------------------------------------------------------------------------
# Tiling helpers
# --------------------------------------------------------------------------

def _pick_tk(K, max_tk=2048):
    """Largest 128-multiple that divides K (never pads K); full K if K%128!=0."""
    if K % 128 != 0:
        return K
    nk = K // 128
    best = 1
    for d in range(1, nk + 1):
        if nk % d == 0 and d * 128 <= max_tk:
            best = d
    return best * 128


def _pick_tn(Np):
    for t in (512, 256, 128):
        if Np % t == 0:
            return t
    return Np


def _pick_tbh(H, W):
    best = 1
    for t in range(1, H + 1):
        if H % t == 0 and t * W <= 512:
            best = t
    return best


def _elem_tile(M):
    tb = min(512, _rup(M, 8))
    return tb, _rup(M, tb)


def _w_spec(tk, tn, ksteps):
    idx = lambda i, j, k: (k, j)
    if ksteps >= 3:
        try:
            return pl.BlockSpec((tk, tn), idx, pipeline_mode=pl.Buffered(3))
        except (TypeError, AttributeError):
            return pl.BlockSpec((tk, tn), idx)
    return pl.BlockSpec((tk, tn), idx)


# --------------------------------------------------------------------------
# Matmul / conv wrappers
# --------------------------------------------------------------------------

def matmul_bias_act(x, w, b=None, act="none", out_dtype=jnp.float32,
                    n_valid=None):
    """out = act(x @ w + b); x:[M,K], w:[K,Np] (bf16 MXU, f32 accumulate)."""
    M, K = x.shape
    _, Np = w.shape
    x = x.astype(jnp.bfloat16)
    w = w.astype(jnp.bfloat16)
    if b is None:
        b = jnp.zeros((1, Np), jnp.float32)
    b = b.reshape(1, Np).astype(jnp.float32)

    tm = 256 if M >= 256 else _rup(M, 8)
    Mp = _rup(M, tm)
    tn = _pick_tn(Np)
    tk = _pick_tk(K)
    ksteps = K // tk
    xp = jnp.pad(x, ((0, Mp - M), (0, 0))) if Mp != M else x

    out = pl.pallas_call(
        functools.partial(_mm_kernel, act=act),
        out_shape=jax.ShapeDtypeStruct((Mp, Np), out_dtype),
        grid_spec=pltpu.PrefetchScalarGridSpec(
            num_scalar_prefetch=0,
            grid=(Mp // tm, Np // tn, ksteps),
            in_specs=[pl.BlockSpec((tm, tk), lambda i, j, k: (i, k)),
                      _w_spec(tk, tn, ksteps),
                      pl.BlockSpec((1, tn), lambda i, j, k: (0, j))],
            out_specs=pl.BlockSpec((tm, tn), lambda i, j, k: (i, j)),
            scratch_shapes=[pltpu.VMEM((tm, tn), jnp.float32)],
        ),
        compiler_params=pltpu.CompilerParams(
            dimension_semantics=("parallel", "parallel", "arbitrary")),
    )(xp, w, b)
    nv = Np if n_valid is None else n_valid
    return out[:M, :nv]


def _use_direct(H, W, Cin, KH, KW, Np):
    if KH != 3 or KW != 3:
        return False
    if W % 16 != 0 or Cin < 64:
        return False
    Hp = H + (KH - 1)          # padding == dilation for all SCANet 3x3 convs
    tn = 256 if Np % 256 == 0 else 128
    tbh = _pick_tbh(H, W)
    x_bytes = 2 * KW * Hp * W * Cin * 2
    w_bytes = 2 * KH * KW * Cin * tn * 2
    o_bytes = 2 * tbh * W * tn * 2
    acc_bytes = tbh * W * tn * 4
    return (x_bytes + w_bytes + o_bytes + acc_bytes) <= 28 * 1024 * 1024


def _conv_direct(x, w, b, KH, KW, dil, act, out_dtype, cout):
    N, H, W, Cin = x.shape
    Np = w.shape[-1]
    p = dil * (KH // 2)
    Hp = H + 2 * p
    tn = 256 if Np % 256 == 0 else 128
    tbh = _pick_tbh(H, W)

    xb = x.astype(jnp.bfloat16)
    xp = jnp.pad(xb, ((0, 0), (p, p), (p, p), (0, 0)))        # (N,Hp,Wp,Cin)
    shifts = [xp[:, :, k * dil:k * dil + W, :] for k in range(KW)]
    xs = jnp.stack(shifts, axis=1).reshape(N, KW, Hp * W, Cin)

    kern = functools.partial(_dconv_kernel, W=W, KH=KH, KW=KW, dil=dil,
                             tbh=tbh, act=act)
    out = pl.pallas_call(
        kern,
        out_shape=jax.ShapeDtypeStruct((N, H * W, Np), out_dtype),
        grid_spec=pltpu.PrefetchScalarGridSpec(
            num_scalar_prefetch=0,
            grid=(N, H // tbh, Np // tn),
            in_specs=[
                pl.BlockSpec((1, KW, Hp * W, Cin), lambda n, i, j: (n, 0, 0, 0)),
                pl.BlockSpec((KH * KW, Cin, tn), lambda n, i, j: (0, 0, j)),
                pl.BlockSpec((1, tn), lambda n, i, j: (0, j)),
            ],
            out_specs=pl.BlockSpec((1, tbh * W, tn), lambda n, i, j: (n, i, j)),
            scratch_shapes=[pltpu.VMEM((tbh * W, tn), jnp.float32)],
        ),
        compiler_params=pltpu.CompilerParams(
            dimension_semantics=("parallel", "parallel", "parallel"),
            vmem_limit_bytes=40 * 1024 * 1024),
    )(xs, w, b)
    return out[:, :, :cout].reshape(N, H, W, cout)


def conv2d(x, p, padding, dilation=1, act="none", out_dtype=jnp.bfloat16):
    """Stride-1 'same' 3x3 conv (NHWC), pre-padded (KH*KW, Cin, Np) bf16 weight."""
    N, H, W, Cin = x.shape
    KH, KW, cout = p['kh'], p['kw'], p['cout']
    w, b = p['w'], p['b']
    Np = w.shape[-1]
    assert Cin == w.shape[1]
    assert padding == dilation * (KH // 2)

    if _use_direct(H, W, Cin, KH, KW, Np):
        return _conv_direct(x, w, b, KH, KW, dilation, act, out_dtype, cout)

    # im2col fallback (bf16 patches, K never padded).
    xb = x.astype(jnp.bfloat16)
    xp = jnp.pad(xb, ((0, 0), (padding, padding), (padding, padding), (0, 0)))
    taps = []
    for ky in range(KH):
        for kx in range(KW):
            taps.append(xp[:, ky * dilation: ky * dilation + H,
                           kx * dilation: kx * dilation + W, :])
    pat = jnp.stack(taps, axis=3).reshape(N * H * W, KH * KW * Cin)
    out = matmul_bias_act(pat, w.reshape(KH * KW * Cin, Np), b, act,
                          out_dtype, n_valid=cout)
    return out.reshape(N, H, W, cout)


# --------------------------------------------------------------------------
# Elementwise / reduction wrappers (tiled, parallel grids)
# --------------------------------------------------------------------------

def maxpool_2x2(x):
    """2x2 stride-2 max pool, NHWC (floor semantics, like torch MaxPool2d)."""
    N, H, W, C = x.shape
    Ho, Wo = H // 2, W // 2
    M = N * Ho * Wo
    tb, Mp = _elem_tile(M)

    def tap(i, j):
        t = x[:, i:2 * Ho:2, j:2 * Wo:2, :].reshape(M, C)
        return jnp.pad(t, ((0, Mp - M), (0, 0))) if Mp != M else t

    out = pl.pallas_call(
        _max4_kernel,
        out_shape=jax.ShapeDtypeStruct((Mp, C), x.dtype),
        grid_spec=pltpu.PrefetchScalarGridSpec(
            num_scalar_prefetch=0, grid=(Mp // tb,),
            in_specs=[pl.BlockSpec((tb, C), lambda i: (i, 0))] * 4,
            out_specs=pl.BlockSpec((tb, C), lambda i: (i, 0)),
        ),
        compiler_params=pltpu.CompilerParams(dimension_semantics=("parallel",)),
    )(tap(0, 0), tap(0, 1), tap(1, 0), tap(1, 1))
    return out[:M].reshape(N, Ho, Wo, C)


def channel_stats(x):
    """torch SpatialAttention stats: per-pixel [max, mean] over channels."""
    N, H, W, C = x.shape
    M = N * H * W
    tb, Mp = _elem_tile(M)
    xf = x.reshape(M, C)
    if Mp != M:
        xf = jnp.pad(xf, ((0, Mp - M), (0, 0)))
    out = pl.pallas_call(
        _chan_stats_kernel,
        out_shape=jax.ShapeDtypeStruct((Mp, 2), jnp.bfloat16),
        grid_spec=pltpu.PrefetchScalarGridSpec(
            num_scalar_prefetch=0, grid=(Mp // tb,),
            in_specs=[pl.BlockSpec((tb, C), lambda i: (i, 0))],
            out_specs=pl.BlockSpec((tb, 2), lambda i: (i, 0)),
        ),
        compiler_params=pltpu.CompilerParams(dimension_semantics=("parallel",)),
    )(xf)
    return out[:M].reshape(N, H, W, 2)


def global_maxavg_pool(x):
    """Global max / avg pool over H*W -> two (N, C) f32 arrays."""
    N, H, W, C = x.shape
    HW = H * W
    thw = 512 if (HW % 512 == 0 and HW > 512) else HW
    tc = 512 if C % 512 == 0 else (256 if C % 256 == 0 else C)
    xr = x.reshape(N, HW, C)
    mx, av = pl.pallas_call(
        functools.partial(_gpool_kernel, hw_total=HW),
        out_shape=(jax.ShapeDtypeStruct((N, 1, C), jnp.float32),
                   jax.ShapeDtypeStruct((N, 1, C), jnp.float32)),
        grid_spec=pltpu.PrefetchScalarGridSpec(
            num_scalar_prefetch=0, grid=(N, C // tc, HW // thw),
            in_specs=[pl.BlockSpec((1, thw, tc), lambda n, j, k: (n, k, j))],
            out_specs=[pl.BlockSpec((1, 1, tc), lambda n, j, k: (n, 0, j))] * 2,
            scratch_shapes=[pltpu.VMEM((1, 1, tc), jnp.float32),
                            pltpu.VMEM((1, 1, tc), jnp.float32)],
        ),
        compiler_params=pltpu.CompilerParams(
            dimension_semantics=("parallel", "parallel", "arbitrary")),
    )(xr)
    return mx.reshape(N, C), av.reshape(N, C)


def sca_combine(x, sa, ca):
    """x_next = (x * sa) * (x * ca) + x ; x:(B,H,W,C), sa:(B,H,W,1), ca:(B,C)."""
    B, H, W, C = x.shape
    HW = H * W
    thw = 512 if (HW % 512 == 0 and HW > 512) else HW
    out = pl.pallas_call(
        _sca_combine_kernel,
        out_shape=jax.ShapeDtypeStruct((B, HW, C), jnp.bfloat16),
        grid_spec=pltpu.PrefetchScalarGridSpec(
            num_scalar_prefetch=0, grid=(B, HW // thw),
            in_specs=[pl.BlockSpec((1, thw, C), lambda b, t: (b, t, 0)),
                      pl.BlockSpec((1, thw, 1), lambda b, t: (b, t, 0)),
                      pl.BlockSpec((1, 1, C), lambda b, t: (b, 0, 0))],
            out_specs=pl.BlockSpec((1, thw, C), lambda b, t: (b, t, 0)),
        ),
        compiler_params=pltpu.CompilerParams(
            dimension_semantics=("parallel", "parallel")),
    )(x.reshape(B, HW, C), sa.reshape(B, HW, 1), ca.reshape(B, 1, C))
    return out.reshape(B, H, W, C)


# --------------------------------------------------------------------------
# Parameters (deterministic He init, pre-padded / pre-reshaped / bf16)
# --------------------------------------------------------------------------

FRONT_CFG = [64, 64, 'M', 128, 128, 'M', 256, 256, 256, 'M', 512, 512, 512]


def _he_conv(key, kh, kw, cin, cout):
    std = (2.0 / (kh * kw * cin)) ** 0.5
    return jax.random.normal(key, (kh * kw, cin, cout), jnp.float32) * std


def prep_conv(w_f32, kh, kw, cout, bias=None):
    cin = w_f32.shape[1]
    npad = _rup(cout, 128)
    w = jnp.pad(w_f32, ((0, 0), (0, 0), (0, npad - cout))).astype(jnp.bfloat16)
    if bias is None:
        bias = jnp.zeros((cout,), jnp.float32)
    b = jnp.pad(bias.astype(jnp.float32), (0, npad - cout)).reshape(1, npad)
    return {'w': w, 'b': b, 'kh': kh, 'kw': kw, 'cin': cin, 'cout': cout}


def make_conv(key, kh, kw, cin, cout):
    return prep_conv(_he_conv(key, kh, kw, cin, cout), kh, kw, cout)


def make_mat(key, cin, cout):
    std = (2.0 / cin) ** 0.5
    w = jax.random.normal(key, (cin, cout), jnp.float32) * std
    npad = _rup(cout, 128)
    w = jnp.pad(w, ((0, 0), (0, npad - cout))).astype(jnp.bfloat16)
    return {'w': w, 'cout': cout}


def make_front_params(key, cfg, in_ch=3):
    layers = []
    for v in cfg:
        if v == 'M':
            layers.append(('M', None))
        else:
            key, k1 = jax.random.split(key)
            layers.append(('C', make_conv(k1, 3, 3, in_ch, v)))
            in_ch = v
    return layers, key


def make_sca_params(key, channel=512, reduction=16):
    ks = jax.random.split(key, 5)
    # fra_SA / flow_SA fused into one 2-output 3x3 conv (col0 / col1).
    sa_w = jnp.concatenate([_he_conv(ks[0], 3, 3, 2, 1),
                            _he_conv(ks[1], 3, 3, 2, 1)], axis=-1)
    return {
        'sa': prep_conv(sa_w, 3, 3, 2),
        'ca_w1': make_mat(ks[2], 2 * channel, (2 * channel) // reduction),
        'ca_w2': make_mat(ks[3], (2 * channel) // reduction, 2 * channel),
        'mlp': make_mat(ks[4], 2 * channel, channel),
    }


def make_params(seed=0):
    key = jax.random.PRNGKey(seed)
    p = {}
    p['front1'], key = make_front_params(key, FRONT_CFG)
    p['front2'], key = make_front_params(key, FRONT_CFG)
    key, k1, k2, k3 = jax.random.split(key, 4)
    p['sca1'] = make_sca_params(k1)
    p['sca2'] = make_sca_params(k2)
    p['sca3'] = make_sca_params(k3)
    # conv1/conv2/conv3 + (1/8,1/16,1/32) weighted add, fused by linearity.
    key, kb1, kb2, kb3 = jax.random.split(key, 4)
    wb = jnp.concatenate([_he_conv(kb1, 3, 3, 1024, 512) * 0.125,
                          _he_conv(kb2, 3, 3, 1024, 512) * 0.0625,
                          _he_conv(kb3, 3, 3, 1024, 512) * 0.03125], axis=1)
    p['back'] = prep_conv(wb, 3, 3, 512)
    key, *ks = jax.random.split(key, 8)
    p['dila1'] = make_conv(ks[0], 3, 3, 512, 256)
    p['dila2'] = make_conv(ks[1], 3, 3, 512, 256)
    p['dila3'] = make_conv(ks[2], 3, 3, 512, 256)
    p['den2_0'] = make_conv(ks[3], 3, 3, 768, 256)
    p['den2_1'] = make_conv(ks[4], 3, 3, 256, 128)
    p['den2_2'] = make_conv(ks[5], 3, 3, 128, 64)
    p['den2_3'] = make_conv(ks[6], 3, 3, 64, 1)
    return p


# --------------------------------------------------------------------------
# Forward pass
# --------------------------------------------------------------------------

def run_front(layers, x):
    for kind, p in layers:
        if kind == 'M':
            x = maxpool_2x2(x)
        else:
            x = conv2d(x, p, padding=1, dilation=1, act="relu")
    return x


def channel_attention(x, w1p, w2p):
    """torch ChannelAttention: sigmoid(se(maxpool) + se(avgpool)) -> (N, 2C)."""
    N = x.shape[0]
    mx, av = global_maxavg_pool(x)                       # (N, 2C) f32 each
    stacked = jnp.concatenate([mx, av], axis=0)          # (2N, 2C) shared SE MLP
    h = matmul_bias_act(stacked, w1p['w'], None, act="relu",
                        out_dtype=jnp.float32, n_valid=w1p['cout'])
    y = matmul_bias_act(h, w2p['w'], None, act="none",
                        out_dtype=jnp.float32, n_valid=w2p['cout'])
    return jax.nn.sigmoid(y[:N] + y[N:])                 # tiny elementwise glue


def sca_forward(p, x1, x2):
    N, H, W, C = x1.shape
    xs = jnp.concatenate([x1, x2], axis=0)               # (2N,H,W,C) both streams
    stats = channel_stats(xs)                            # (2N,H,W,2)
    sa_both = conv2d(stats, p['sa'], padding=1, dilation=1, act="sigmoid")
    sa1 = sa_both[:N, :, :, 0:1]                         # stream-1 SA conv (col 0)
    sa2 = sa_both[N:, :, :, 1:2]                         # stream-2 SA conv (col 1)
    xcon = jnp.concatenate([x1, x2], axis=-1)            # (N,H,W,2C)
    ca = channel_attention(xcon, p['ca_w1'], p['ca_w2'])  # (N, 2C)
    ca = matmul_bias_act(ca, p['mlp']['w'], None, act="none",
                         out_dtype=jnp.float32, n_valid=p['mlp']['cout'])
    sab = jnp.concatenate([sa1, sa2], axis=0)            # (2N,H,W,1)
    cab = jnp.concatenate([ca, ca], axis=0)              # (2N,C)
    xn = sca_combine(xs, sab, cab)                       # (x*sa)*(x*ca)+x
    return xn[:N], xn[N:]


def scanet_forward(params, x1, x2):
    h1 = run_front(params['front1'], x1)
    h2 = run_front(params['front2'], x2)

    o1a, o2a = sca_forward(params['sca1'], h1, h2)
    o1b, o2b = sca_forward(params['sca2'], o1a, o2a)
    o1c, _o2c = sca_forward(params['sca3'], o1b, o2b)

    # conv1(con_fir)/8 + conv2(con_sec)/16 + conv3(con_thi)/32 as ONE conv
    # (con_thi = cat(o1c, o1c) matches the torch code).
    fused_in = jnp.concatenate([o1a, o2a, o1b, o2b, o1c, o1c], axis=-1)  # 3072 ch
    add1 = conv2d(fused_in, params['back'], padding=1, dilation=1)       # 512 ch

    d1 = conv2d(add1, params['dila1'], padding=1, dilation=1)
    d2 = conv2d(add1, params['dila2'], padding=2, dilation=2)
    d3 = conv2d(add1, params['dila3'], padding=3, dilation=3)
    cat_d = jnp.concatenate([d1, d2, d3], axis=-1)                       # 768 ch

    y = conv2d(cat_d, params['den2_0'], padding=1)
    y = conv2d(y, params['den2_1'], padding=1)
    y = conv2d(y, params['den2_2'], padding=1)
    y = conv2d(y, params['den2_3'], padding=1, act="abs",
               out_dtype=jnp.float32)
    return y                                             # (N, H/8, W/8, 1) NHWC


if __name__ == "__main__":
    key = jax.random.PRNGKey(0)
    k1, k2 = jax.random.split(key)
    # Small inputs: batch=1, 3 channels, 32x32 spatial (VGG front -> 4x4x512).
    x1 = jax.random.normal(k1, (1, 32, 32, 3), jnp.float32)
    x2 = jax.random.normal(k2, (1, 32, 32, 3), jnp.float32)

    params = make_params(seed=0)
    out = scanet_forward(params, x1, x2)
    out = jax.block_until_ready(out)

    assert out.shape == (1, 4, 4, 1)
    assert bool(jnp.all(jnp.isfinite(out)))
    assert bool(jnp.all(out >= 0.0))   # torch.abs at the end
    print("KERNEL_OK")
</pallas_src>

<mosaic_0001>
module attributes {stable_mosaic.version = 11 : i64} {
  func.func @_mm_kernel(%arg0: i32, %arg1: i32, %arg2: i32, %arg3: memref<256x27xbf16, #tpu.memory_space<vmem>>, %arg4: memref<27x128xbf16, #tpu.memory_space<vmem>>, %arg5: memref<1x128xf32, #tpu.memory_space<vmem>>, %arg6: memref<256x128xbf16, #tpu.memory_space<vmem>>, %arg7: memref<256x128xf32, #tpu.memory_space<vmem>>) attributes {dimension_semantics = [#tpu.dimension_semantics<parallel>, #tpu.dimension_semantics<parallel>, #tpu.dimension_semantics<arbitrary>], iteration_bounds = array<i64: 4, 1, 1>, scalar_prefetch = 0 : i64, scratch_operands = 1 : i64, tpu.core_type = #tpu.core_type<tc>, window_params = [{transform_indices = @transform_0, window_bounds = array<i64: 256, 27>}, {transform_indices = @transform_1, window_bounds = array<i64: 27, 128>}, {transform_indices = @transform_2, window_bounds = array<i64: 1, 128>}, {transform_indices = @transform_3, window_bounds = array<i64: 256, 128>}]} {
    %c0_i32 = arith.constant 0 : i32
    %0 = arith.cmpi eq, %arg2, %c0_i32 : i32
    %1 = arith.extui %0 : i1 to i32
    %c0_i32_0 = arith.constant 0 : i32
    %2 = arith.cmpi ne, %1, %c0_i32_0 : i32
    scf.if %2 {
      %cst_10 = arith.constant 0.000000e+00 : f32
      %12 = vector.broadcast %cst_10 : f32 to vector<256x128xf32>
      %c0_11 = arith.constant 0 : index
      %c0_12 = arith.constant 0 : index
      %13 = vector.load %arg7[%c0_11, %c0_12] : memref<256x128xf32, #tpu.memory_space<vmem>>, vector<256x128xf32>
      tpu.vector_store %arg7[%c0_11, %c0_12], %12 {strides = array<i32>} : memref<256x128xf32, #tpu.memory_space<vmem>>, vector<256x128xf32>,
    } else {
    }
    %c0 = arith.constant 0 : index
    %c0_1 = arith.constant 0 : index
    %3 = vector.load %arg7[%c0, %c0_1] : memref<256x128xf32, #tpu.memory_space<vmem>>, vector<256x128xf32>
    %c0_2 = arith.constant 0 : index
    %c0_3 = arith.constant 0 : index
    %4 = vector.load %arg3[%c0_2, %c0_3] : memref<256x27xbf16, #tpu.memory_space<vmem>>, vector<256x27xbf16>
    %c0_4 = arith.constant 0 : index
    %c0_5 = arith.constant 0 : index
    %5 = vector.load %arg4[%c0_4, %c0_5] : memref<27x128xbf16, #tpu.memory_space<vmem>>, vector<27x128xbf16>
    %cst = arith.constant dense<0.000000e+00> : vector<256x128xf32>
    %6 = tpu.matmul %4, %5, %cst {dimension_numbers = #tpu.dot_dimension_numbers<[1], [0], [0], [1], [0, 0, 1, 1], [], []>} : vector<256x27xbf16>, vector<27x128xbf16>, vector<256x128xf32> -> vector<256x128xf32>
    %7 = arith.addf %3, %6 : vector<256x128xf32>
    %c0_6 = arith.constant 0 : index
    %c0_7 = arith.constant 0 : index
    %8 = vector.load %arg7[%c0_6, %c0_7] : memref<256x128xf32, #tpu.memory_space<vmem>>, vector<256x128xf32>
    tpu.vector_store %arg7[%c0_6, %c0_7], %7 {strides = array<i32>} : memref<256x128xf32, #tpu.memory_space<vmem>>, vector<256x128xf32>,
    %c0_i32_8 = arith.constant 0 : i32
    %9 = arith.cmpi eq, %arg2, %c0_i32_8 : i32
    %10 = arith.extui %9 : i1 to i32
    %c0_i32_9 = arith.constant 0 : i32
    %11 = arith.cmpi ne, %10, %c0_i32_9 : i32
    scf.if %11 {
      %c0_10 = arith.constant 0 : index
      %c0_11 = arith.constant 0 : index
      %12 = vector.load %arg7[%c0_10, %c0_11] : memref<256x128xf32, #tpu.memory_space<vmem>>, vector<256x128xf32>
      %c0_12 = arith.constant 0 : index
      %c0_13 = arith.constant 0 : index
      %13 = vector.load %arg5[%c0_12, %c0_13] : memref<1x128xf32, #tpu.memory_space<vmem>>, vector<1x128xf32>
      %14 = vector.broadcast %13 : vector<1x128xf32> to vector<256x128xf32>
      %15 = arith.addf %12, %14 : vector<256x128xf32>
      %cst_14 = arith.constant 0.000000e+00 : f32
      %16 = vector.broadcast %cst_14 : f32 to vector<256x128xf32>
      %17 = arith.maximumf %15, %16 : vector<256x128xf32>
      %18 = arith.truncf %17 : vector<256x128xf32> to vector<256x128xbf16>
      %c0_15 = arith.constant 0 : index
      %c0_16 = arith.constant 0 : index
      %19 = vector.load %arg6[%c0_15, %c0_16] : memref<256x128xbf16, #tpu.memory_space<vmem>>, vector<256x128xbf16>
      tpu.vector_store %arg6[%c0_15, %c0_16], %18 {strides = array<i32>} : memref<256x128xbf16, #tpu.memory_space<vmem>>, vector<256x128xbf16>,
    } else {
    }
    return
  }
  func.func @transform_0(%arg0: i32, %arg1: i32, %arg2: i32) -> (i32, i32) {
    %c0_i32 = arith.constant 0 : i32
    return %arg0, %arg2 : i32, i32
  }
  func.func @transform_1(%arg0: i32, %arg1: i32, %arg2: i32) -> (i32, i32) {
    %c0_i32 = arith.constant 0 : i32
    return %arg2, %arg1 : i32, i32
  }
  func.func @transform_2(%arg0: i32, %arg1: i32, %arg2: i32) -> (i32, i32) {
    %c0_i32 = arith.constant 0 : i32
    %c0_i32_0 = arith.constant 0 : i32
    return %c0_i32, %arg1 : i32, i32
  }
  func.func @transform_3(%arg0: i32, %arg1: i32, %arg2: i32) -> (i32, i32) {
    %c0_i32 = arith.constant 0 : i32
    return %arg0, %arg1 : i32, i32
  }
}

</mosaic_0001>

<llo_original>
// kernel: tpu_custom_call.1
$region0: #{tpu_custom_call.1}
  #allocation0 [shape = 'u32[]', space=smem, size = 0x4, offset = 0x4, fixed_abs, tag = 'smem constant byte address 0x4 - core index']
  #allocation1 [shape = 'u32[144,128]{1,0:T(1,128)}', space=vmem, size = 0x12000, scoped, tag = 'internal scratch']
  #allocation2 [shape = 'f32[256,128]{1,0:T(8,128)}', space=vmem, size = 0x20000, scoped, tag = 'scratch operand']
  %s0 = inlined_call_operand.vmem [shape: bf16[1024,27], index: 0, kind: input, shape index: {}]
  %s1 = inlined_call_operand.vmem [shape: bf16[27,128], index: 1, kind: input, shape index: {}]
  %s2 = inlined_call_operand.vmem [shape: f32[1,128], index: 2, kind: input, shape index: {}]
  %s3 = inlined_call_operand.hbm [shape: bf16[1024,128], index: 3, kind: output, shape index: {}]
  %s4 = sld [smem:[#allocation0]]
  $region53: #{tpu_custom_call.1} parent=0
    _
  %s6 = ssub.s32 1, %s4
  %s7 = scalar_select 0, %s6, %s4
  $region1: #{tpu_custom_call.1} parent=0
    #allocation3 [shape = 'u8[131072]{0}', space=vmem, size = 0x20000, scoped, tag = 'output window, operand 0']
    #allocation4 [shape = 's32[2]{0}', space=sflag, size = 0x8, scoped, tag = 'scoped memory for tpu_custom_call.1']
    %8 = vsyncpa [#allocation4], 0
    %s9 = scalar_lea.sflag [#allocation4], 1
    %10 = vsyncpa %s9, 0
    loop: start=0, step=1, limit=6
    $region2: #{tpu_custom_call.1} parent=1 // loop_pre_header
      _
    $region3: #{tpu_custom_call.1} parent=1 // loop_header
      %s12 = sphi 0, %s16
      %p13 = scmp.ge.s32.totalorder %s12, 6
      %s19 = sphi 0, %s38
      %s20 = sphi 0, %s34
      %s21 = sphi 0, %s30
      %s22 = sphi 0, %s19
      %s23 = sphi 0, %s20
      %s24 = sphi 0, %s21
      %s25 = sphi 0, %s22
      %s26 = sphi 0, %s23
      %s27 = sphi 0, %s24
      %s43 = sphi 0, %s45
      %s46 = sphi 0, %s43
      %s47 = sphi 0, %s46
      %s63 = sphi 0, %s47
      %s71 = sphi 0, %s73
      %s74 = sphi 0, %s71
      %s75 = sphi 0, %s74
      %s91 = sphi 0, %s75
      %s97 = sphi 0, %s99
      %s100 = sphi 0, %s97
      %s101 = sphi 0, %s100
      %s117 = sphi 0, %s101
      %s125 = sphi 0, %s127
      %s128 = sphi 0, %s125
      %s129 = sphi 0, %s128
      %s145 = sphi 0, %s129
    $region4: #{tpu_custom_call.1} parent=1 // loop_header_branch
      %15 = sbr.rel (%p13) target = $region8
    $region5: #{tpu_custom_call.1} parent=1 // loop_body
      %s17 = ssub.s32 %s12, 1
      %s18 = ssub.s32 %s12, 2
      %s28 = sadd.s32 1, %s21
      %p29 = scmp.ge.s32.totalorder %s28, 1
      %s30 = scalar_select %p29, 0, %s28
      %s31 = sadd.s32 1, %s20
      %s32 = scalar_select %p29, %s31, %s20
      %p33 = scmp.ge.s32.totalorder %s32, 1
      %s34 = scalar_select %p33, 0, %s32
      %s35 = sadd.s32 1, %s19
      %s36 = scalar_select %p33, %s35, %s19
      %p37 = scmp.ge.s32.totalorder %s36, 4
      %s38 = scalar_select %p37, 0, %s36
      %s39 = ssub.s32 %s19, %s38
      %s40 = ssub.s32 %s21, %s30
      %s41 = sor.u32 %s39, %s40
      %p42 = scmp.eq.s32.totalorder %s41, 0
      %s44 = sadd.s32 %s43, 1
      %s45 = scalar_select %p42, %s43, %s44
      %p48 = pneg %p42
      %p49 = scmp.eq.s32.totalorder %s12, 3
      %p50 = por %p48, %p49
      %p51 = scmp.ne.s32.totalorder %s43, %s46
      %p52 = scmp.eq.s32.totalorder %s12, 0
      %p53 = por %p51, %p52
      %p54 = scmp.ne.s32.totalorder %s43, %s46
      %p55 = scmp.eq.s32.totalorder %s17, 3
      %p56 = por %p54, %p55
      %p57 = scmp.ne.s32.totalorder %s46, %s47
      %p58 = scmp.eq.s32.totalorder %s17, 0
      %p59 = por %p57, %p58
      %p60 = scmp.ne.s32.totalorder %s46, %s47
      %p61 = scmp.eq.s32.totalorder %s18, 3
      %p62 = por %p60, %p61
      %p64 = scmp.ne.s32.totalorder %s47, %s63
      %p65 = scmp.eq.s32.totalorder %s18, 0
      %p66 = por %p64, %p65
      %s67 = ssub.s32 %s21, %s30
      %s68 = ssub.s32 %s20, %s34
      %s69 = sor.u32 %s67, %s68
      %p70 = scmp.eq.s32.totalorder %s69, 0
      %s72 = sadd.s32 %s71, 1
      %s73 = scalar_select %p70, %s71, %s72
      %p76 = pneg %p70
      %p77 = scmp.eq.s32.totalorder %s12, 3
      %p78 = por %p76, %p77
      %p79 = scmp.ne.s32.totalorder %s71, %s74
      %p80 = scmp.eq.s32.totalorder %s12, 0
      %p81 = por %p79, %p80
      %p82 = scmp.ne.s32.totalorder %s71, %s74
      %p83 = scmp.eq.s32.totalorder %s17, 3
      %p84 = por %p82, %p83
      %p85 = scmp.ne.s32.totalorder %s74, %s75
      %p86 = scmp.eq.s32.totalorder %s17, 0
      %p87 = por %p85, %p86
      %p88 = scmp.ne.s32.totalorder %s74, %s75
      %p89 = scmp.eq.s32.totalorder %s18, 3
      %p90 = por %p88, %p89
      %p92 = scmp.ne.s32.totalorder %s75, %s91
      %p93 = scmp.eq.s32.totalorder %s18, 0
      %p94 = por %p92, %p93
      %s95 = ssub.s32 %s20, %s34
      %p96 = scmp.eq.s32.totalorder %s95, 0
      %s98 = sadd.s32 %s97, 1
      %s99 = scalar_select %p96, %s97, %s98
      %p102 = pneg %p96
      %p103 = scmp.eq.s32.totalorder %s12, 3
      %p104 = por %p102, %p103
      %p105 = scmp.ne.s32.totalorder %s97, %s100
      %p106 = scmp.eq.s32.totalorder %s12, 0
      %p107 = por %p105, %p106
      %p108 = scmp.ne.s32.totalorder %s97, %s100
      %p109 = scmp.eq.s32.totalorder %s17, 3
      %p110 = por %p108, %p109
      %p111 = scmp.ne.s32.totalorder %s100, %s101
      %p112 = scmp.eq.s32.totalorder %s17, 0
      %p113 = por %p111, %p112
      %p114 = scmp.ne.s32.totalorder %s100, %s101
      %p115 = scmp.eq.s32.totalorder %s18, 3
      %p116 = por %p114, %p115
      %p118 = scmp.ne.s32.totalorder %s101, %s117
      %p119 = scmp.eq.s32.totalorder %s18, 0
      %p120 = por %p118, %p119
      %s121 = ssub.s32 %s19, %s38
      %s122 = ssub.s32 %s20, %s34
      %s123 = sor.u32 %s121, %s122
      %p124 = scmp.eq.s32.totalorder %s123, 0
      %s126 = sadd.s32 %s125, 1
      %s127 = scalar_select %p124, %s125, %s126
      %p130 = pneg %p124
      %p131 = scmp.eq.s32.totalorder %s12, 3
      %p132 = por %p130, %p131
      %p133 = scmp.ne.s32.totalorder %s125, %s128
      %p134 = scmp.eq.s32.totalorder %s12, 0
      %p135 = por %p133, %p134
      %p136 = scmp.ne.s32.totalorder %s125, %s128
      %p137 = scmp.eq.s32.totalorder %s17, 3
      %p138 = por %p136, %p137
      %p139 = scmp.ne.s32.totalorder %s128, %s129
      %p140 = scmp.eq.s32.totalorder %s17, 0
      %p141 = por %p139, %p140
      %p142 = scmp.ne.s32.totalorder %s128, %s129
      %p143 = scmp.eq.s32.totalorder %s18, 3
      %p144 = por %p142, %p143
      %p146 = scmp.ne.s32.totalorder %s129, %s145
      %p147 = scmp.eq.s32.totalorder %s18, 0
      %p148 = por %p146, %p147
      %p149 = scmp.le.s32.totalorder 1, %s12
      %p150 = scmp.lt.s32.totalorder %s12, 5
      %p151 = pnand %p149, %p150
      %p152 = pneg %p151
      // Predicated region
      $region9: #{tpu_custom_call.1} parent=5 // pred_check
        _
      $region10: #{tpu_custom_call.1} parent=5 // pred_check_branch
        %154 = sbr.rel (%p151) target = $region12
      $region11: #{tpu_custom_call.1} parent=5 // pred_region
        %s155 = ssub.s32 %s12, 1
        // Predicated region
        $region13: #{tpu_custom_call.1} parent=11 // pred_check
          %p156 = pneg %p87
        $region14: #{tpu_custom_call.1} parent=11 // pred_check_branch
          %158 = sbr.rel (%p156) target = $region16
        $region15: #{tpu_custom_call.1} parent=11 // pred_region
          %s159 = smul.u32 4, %s24
          %p160 = scmp.lt.s32.totalorder %s159, 3
          %s161 = scalar_select %p160, %s159, 3
          %p162 = scmp.lt.s32.totalorder %s23, 0
          %s163 = scalar_select %p162, %s23, 0
          %s164 = sadd.s32 %s163, %s161
          %s165 = smul.addr %s164, 4
          %s166 = scalar_lea.vmem %s1, %s165
          %s167 = smul.u32 4, %s24
        $region16: #{tpu_custom_call.1} parent=11 // pred_fallthru
          _
        // Predicated region
        $region17: #{tpu_custom_call.1} parent=11 // pred_check
          %p168 = pneg %p113
        $region18: #{tpu_custom_call.1} parent=11 // pred_check_branch
          %170 = sbr.rel (%p168) target = $region20
        $region19: #{tpu_custom_call.1} parent=11 // pred_region
          %p171 = scmp.lt.s32.totalorder %s23, 0
          %s172 = scalar_select %p171, %s23, 0
          %s173 = scalar_lea.vmem %s2, %s172
        $region20: #{tpu_custom_call.1} parent=11 // pred_fallthru
          _
      $region12: #{tpu_custom_call.1} parent=5 // pred_fallthru
        _
      %p174 = scmp.lt.s32.totalorder %s12, 4
      // Predicated region
      $region21: #{tpu_custom_call.1} parent=5 // pred_check
        %p175 = pneg %p174
      $region22: #{tpu_custom_call.1} parent=5 // pred_check_branch
        %177 = sbr.rel (%p175) target = $region24
      $region23: #{tpu_custom_call.1} parent=5 // pred_region
        // Predicated region
        $region25: #{tpu_custom_call.1} parent=23 // pred_check
          %p178 = pneg %p53
        $region26: #{tpu_custom_call.1} parent=23 // pred_check_branch
          %180 = sbr.rel (%p178) target = $region28
        $region27: #{tpu_custom_call.1} parent=23 // pred_region
          %s181 = smul.u32 32, %s19
          %p182 = scmp.lt.s32.totalorder %s181, 127
          %s183 = scalar_select %p182, %s181, 127
          %p184 = scmp.lt.s32.totalorder %s21, 0
          %s185 = scalar_select %p184, %s21, 0
          %s186 = sadd.s32 %s185, %s183
          %s187 = smul.addr %s186, 4
          %s188 = scalar_lea.vmem %s0, %s187
          %s189 = smul.u32 32, %s19
        $region28: #{tpu_custom_call.1} parent=23 // pred_fallthru
          _
      $region24: #{tpu_custom_call.1} parent=5 // pred_fallthru
        _
      %p190 = scmp.le.s32.totalorder 1, %s12
      %p191 = scmp.lt.s32.totalorder %s12, 5
      %p192 = pnand %p190, %p191
      %p193 = pneg %p192
      // Predicated region
      $region29: #{tpu_custom_call.1} parent=5 // pred_check
        _
      $region30: #{tpu_custom_call.1} parent=5 // pred_check_branch
        %195 = sbr.rel (%p192) target = $region32
      $region31: #{tpu_custom_call.1} parent=5 // pred_region
        %s196 = ssub.s32 %s12, 1
        %s197 = smul.u32 32, %s22
        %p198 = scmp.lt.s32.totalorder %s197, 127
        %s199 = scalar_select %p198, %s197, 127
        %p200 = scmp.lt.s32.totalorder %s24, 0
        %s201 = scalar_select %p200, %s24, 0
        %s202 = sadd.s32 %s201, %s199
        %s203 = smul.addr %s202, 4
        %s204 = scalar_lea.vmem %s0, %s203
        %p205 = pneg %p59
        %p206 = pneg %p56
        %s207 = smul.u32 4, %s24
        %p208 = scmp.lt.s32.totalorder %s207, 3
        %s209 = scalar_select %p208, %s207, 3
        %p210 = scmp.lt.s32.totalorder %s23, 0
        %s211 = scalar_select %p210, %s23, 0
        %s212 = sadd.s32 %s211, %s209
        %s213 = smul.addr %s212, 4
        %s214 = scalar_lea.vmem %s1, %s213
        %p215 = pneg %p87
        %p216 = pneg %p84
        %p217 = scmp.lt.s32.totalorder %s23, 0
        %s218 = scalar_select %p217, %s23, 0
        %s219 = scalar_lea.vmem %s2, %s218
        %p220 = pneg %p113
        %p221 = pneg %p110
        %p222 = pneg %p141
        %p223 = pneg %p138
        %s224 = sand.u32 %s128, 1
        %s225 = scalar_lea.sflag [#allocation4], %s224
        %s226 = sand.u32 %s128, 1
        %s227 = smul.addr %s226, 128
        %s228 = scalar_lea.vmem [#allocation3], %s227
        %s229 = smul.u32 32, %s22
        %p230 = scmp.lt.s32.totalorder %s229, 127
        %s231 = scalar_select %p230, %s229, 127
        %p232 = scmp.lt.s32.totalorder %s24, 0
        %s233 = scalar_select %p232, %s24, 0
        %s234 = sadd.s32 %s233, %s231
        %s235 = smul.addr %s234, 4
        %s236 = scalar_lea.vmem %s0, %s235
        %s237 = smul.u32 32, %s22
        %s238 = smul.u32 4, %s24
        %p239 = scmp.lt.s32.totalorder %s238, 3
        %s240 = scalar_select %p239, %s238, 3
        %p241 = scmp.lt.s32.totalorder %s23, 0
        %s242 = scalar_select %p241, %s23, 0
        %s243 = sadd.s32 %s242, %s240
        %s244 = smul.addr %s243, 4
        %s245 = scalar_lea.vmem %s1, %s244
        %s246 = smul.u32 4, %s24
        %p247 = scmp.lt.s32.totalorder %s23, 0
        %s248 = scalar_select %p247, %s23, 0
        %s249 = scalar_lea.vmem %s2, %s248
        %s250 = smul.u32 32, %s22
        %p252 = scmp.eq.s32.totalorder %s24, 0
        // Predicated region
        $region33: #{tpu_custom_call.1} parent=31 // pred_check
          %p253 = pneg %p252
        $region34: #{tpu_custom_call.1} parent=31 // pred_check_branch
          %255 = sbr.rel (%p253) target = $region36
        $region35: #{tpu_custom_call.1} parent=31 // pred_region
          %256 = vst [vmem:[#allocation2] sm:$0xff] 0.0
          %257 = vst [vmem:[#allocation2 + $0x8] sm:$0xff] 0.0
          %258 = vst [vmem:[#allocation2 + $0x10] sm:$0xff] 0.0
          %259 = vst [vmem:[#allocation2 + $0x18] sm:$0xff] 0.0
          %260 = vst [vmem:[#allocation2 + $0x20] sm:$0xff] 0.0
          %261 = vst [vmem:[#allocation2 + $0x28] sm:$0xff] 0.0
          %262 = vst [vmem:[#allocation2 + $0x30] sm:$0xff] 0.0
          %263 = vst [vmem:[#allocation2 + $0x38] sm:$0xff] 0.0
          %264 = vst [vmem:[#allocation2 + $0x40] sm:$0xff] 0.0
          %265 = vst [vmem:[#allocation2 + $0x48] sm:$0xff] 0.0
          %266 = vst [vmem:[#allocation2 + $0x50] sm:$0xff] 0.0
          %267 = vst [vmem:[#allocation2 + $0x58] sm:$0xff] 0.0
          %268 = vst [vmem:[#allocation2 + $0x60] sm:$0xff] 0.0
          %269 = vst [vmem:[#allocation2 + $0x68] sm:$0xff] 0.0
          %270 = vst [vmem:[#allocation2 + $0x70] sm:$0xff] 0.0
          %271 = vst [vmem:[#allocation2 + $0x78] sm:$0xff] 0.0
          %272 = vst [vmem:[#allocation2 + $0x80] sm:$0xff] 0.0
          %273 = vst [vmem:[#allocation2 + $0x88] sm:$0xff] 0.0
          %274 = vst [vmem:[#allocation2 + $0x90] sm:$0xff] 0.0
          %275 = vst [vmem:[#allocation2 + $0x98] sm:$0xff] 0.0
          %276 = vst [vmem:[#allocation2 + $0xa0] sm:$0xff] 0.0
          %277 = vst [vmem:[#allocation2 + $0xa8] sm:$0xff] 0.0
          %278 = vst [vmem:[#allocation2 + $0xb0] sm:$0xff] 0.0
          %279 = vst [vmem:[#allocation2 + $0xb8] sm:$0xff] 0.0
          %280 = vst [vmem:[#allocation2 + $0xc0] sm:$0xff] 0.0
          %281 = vst [vmem:[#allocation2 + $0xc8] sm:$0xff] 0.0
          %282 = vst [vmem:[#allocation2 + $0xd0] sm:$0xff] 0.0
          %283 = vst [vmem:[#allocation2 + $0xd8] sm:$0xff] 0.0
          %284 = vst [vmem:[#allocation2 + $0xe0] sm:$0xff] 0.0
          %285 = vst [vmem:[#allocation2 + $0xe8] sm:$0xff] 0.0
          %286 = vst [vmem:[#allocation2 + $0xf0] sm:$0xff] 0.0
          %287 = vst [vmem:[#allocation2 + $0xf8] sm:$0xff] 0.0
        $region36: #{tpu_custom_call.1} parent=31 // pred_fallthru
          _
        %v288 = vld [vmem:[#allocation2] sm:$0xff]
        %v289 = vld [vmem:[#allocation2 + $0x8] sm:$0xff]
        %v290 = vld [vmem:[#allocation2 + $0x10] sm:$0xff]
        %v291 = vld [vmem:[#allocation2 + $0x18] sm:$0xff]
        %v292 = vld [vmem:[#allocation2 + $0x20] sm:$0xff]
        %v293 = vld [vmem:[#allocation2 + $0x28] sm:$0xff]
        %v294 = vld [vmem:[#allocation2 + $0x30] sm:$0xff]
        %v295 = vld [vmem:[#allocation2 + $0x38] sm:$0xff]
        %v296 = vld [vmem:[#allocation2 + $0x40] sm:$0xff]
        %v297 = vld [vmem:[#allocation2 + $0x48] sm:$0xff]
        %v298 = vld [vmem:[#allocation2 + $0x50] sm:$0xff]
        %v299 = vld [vmem:[#allocation2 + $0x58] sm:$0xff]
        %v300 = vld [vmem:[#allocation2 + $0x60] sm:$0xff]
        %v301 = vld [vmem:[#allocation2 + $0x68] sm:$0xff]
        %v302 = vld [vmem:[#allocation2 + $0x70] sm:$0xff]
        %v303 = vld [vmem:[#allocation2 + $0x78] sm:$0xff]
        %v304 = vld [vmem:[#allocation2 + $0x80] sm:$0xff]
        %v305 = vld [vmem:[#allocation2 + $0x88] sm:$0xff]
        %v306 = vld [vmem:[#allocation2 + $0x90] sm:$0xff]
        %v307 = vld [vmem:[#allocation2 + $0x98] sm:$0xff]
        %v308 = vld [vmem:[#allocation2 + $0xa0] sm:$0xff]
        %v309 = vld [vmem:[#allocation2 + $0xa8] sm:$0xff]
        %v310 = vld [vmem:[#allocation2 + $0xb0] sm:$0xff]
        %v311 = vld [vmem:[#allocation2 + $0xb8] sm:$0xff]
        %v312 = vld [vmem:[#allocation2 + $0xc0] sm:$0xff]
        %v313 = vld [vmem:[#allocation2 + $0xc8] sm:$0xff]
        %v314 = vld [vmem:[#allocation2 + $0xd0] sm:$0xff]
        %v315 = vld [vmem:[#allocation2 + $0xd8] sm:$0xff]
        %v316 = vld [vmem:[#allocation2 + $0xe0] sm:$0xff]
        %v317 = vld [vmem:[#allocation2 + $0xe8] sm:$0xff]
        %v318 = vld [vmem:[#allocation2 + $0xf0] sm:$0xff]
        %v319 = vld [vmem:[#allocation2 + $0xf8] sm:$0xff]
        %v320 = vld [vmem:[%s236] sm:$0xf]
        %v321 = vld [vmem:[%s236 + $0x4] sm:$0xf]
        %v322 = vld [vmem:[%s236 + $0x8] sm:$0xf]
        %v323 = vld [vmem:[%s236 + $0xc] sm:$0xf]
        %v324 = vld [vmem:[%s236 + $0x10] sm:$0xf]
        %v325 = vld [vmem:[%s236 + $0x14] sm:$0xf]
        %v326 = vld [vmem:[%s236 + $0x18] sm:$0xf]
        %v327 = vld [vmem:[%s236 + $0x1c] sm:$0xf]
        %v328 = vld [vmem:[%s236 + $0x20] sm:$0xf]
        %v329 = vld [vmem:[%s236 + $0x24] sm:$0xf]
        %v330 = vld [vmem:[%s236 + $0x28] sm:$0xf]
        %v331 = vld [vmem:[%s236 + $0x2c] sm:$0xf]
        %v332 = vld [vmem:[%s236 + $0x30] sm:$0xf]
        %v333 = vld [vmem:[%s236 + $0x34] sm:$0xf]
        %v334 = vld [vmem:[%s236 + $0x38] sm:$0xf]
        %v335 = vld [vmem:[%s236 + $0x3c] sm:$0xf]
        %v336 = vld [vmem:[%s236 + $0x40] sm:$0xf]
        %v337 = vld [vmem:[%s236 + $0x44] sm:$0xf]
        %v338 = vld [vmem:[%s236 + $0x48] sm:$0xf]
        %v339 = vld [vmem:[%s236 + $0x4c] sm:$0xf]
        %v340 = vld [vmem:[%s236 + $0x50] sm:$0xf]
        %v341 = vld [vmem:[%s236 + $0x54] sm:$0xf]
        %v342 = vld [vmem:[%s236 + $0x58] sm:$0xf]
        %v343 = vld [vmem:[%s236 + $0x5c] sm:$0xf]
        %v344 = vld [vmem:[%s236 + $0x60] sm:$0xf]
        %v345 = vld [vmem:[%s236 + $0x64] sm:$0xf]
        %v346 = vld [vmem:[%s236 + $0x68] sm:$0xf]
        %v347 = vld [vmem:[%s236 + $0x6c] sm:$0xf]
        %v348 = vld [vmem:[%s236 + $0x70] sm:$0xf]
        %v349 = vld [vmem:[%s236 + $0x74] sm:$0xf]
        %v350 = vld [vmem:[%s236 + $0x78] sm:$0xf]
        %v351 = vld [vmem:[%s236 + $0x7c] sm:$0xf]
        %v352 = vld [vmem:[%s245] sm:$0xf]
        %v353 = vld [vmem:[%s245 + $0x4] sm:$0xf]
        %v354 = vld [vmem:[%s245 + $0x8] sm:$0xf]
        %v355 = vld [vmem:[%s245 + $0xc] sm:$0x3]
        %v388 = vunpack.c.l.b16 %v320
        %v389 = vunpack.c.l.b16 %v321
        %v390 = vunpack.c.l.b16 %v322
        %v391 = vunpack.c.l.b16 %v323
        %v392 = vunpack.c.l.b16 %v324
        %v393 = vunpack.c.l.b16 %v325
        %v394 = vunpack.c.l.b16 %v326
        %v395 = vunpack.c.l.b16 %v327
        %v396 = vunpack.c.l.b16 %v328
        %v397 = vunpack.c.l.b16 %v329
        %v398 = vunpack.c.l.b16 %v330
        %v399 = vunpack.c.l.b16 %v331
        %v400 = vunpack.c.l.b16 %v332
        %v401 = vunpack.c.l.b16 %v333
        %v402 = vunpack.c.l.b16 %v334
        %v403 = vunpack.c.l.b16 %v335
        %v404 = vunpack.c.l.b16 %v336
        %v405 = vunpack.c.l.b16 %v337
        %v406 = vunpack.c.l.b16 %v338
        %v407 = vunpack.c.l.b16 %v339
        %v408 = vunpack.c.l.b16 %v340
        %v409 = vunpack.c.l.b16 %v341
        %v410 = vunpack.c.l.b16 %v342
        %v411 = vunpack.c.l.b16 %v343
        %v412 = vunpack.c.l.b16 %v344
        %v413 = vunpack.c.l.b16 %v345
        %v414 = vunpack.c.l.b16 %v346
        %v415 = vunpack.c.l.b16 %v347
        %v416 = vunpack.c.l.b16 %v348
        %v417 = vunpack.c.l.b16 %v349
        %v418 = vunpack.c.l.b16 %v350
        %v419 = vunpack.c.l.b16 %v351
        %v420 = vpack.c.b16 %v389, %v388
        %v421 = vpack.c.b16 %v391, %v390
        %v422 = vpack.c.b16 %v393, %v392
        %v423 = vpack.c.b16 %v395, %v394
        %v424 = vpack.c.b16 %v397, %v396
        %v425 = vpack.c.b16 %v399, %v398
        %v426 = vpack.c.b16 %v401, %v400
        %v427 = vpack.c.b16 %v403, %v402
        %v428 = vpack.c.b16 %v405, %v404
        %v429 = vpack.c.b16 %v407, %v406
        %v430 = vpack.c.b16 %v409, %v408
        %v431 = vpack.c.b16 %v411, %v410
        %v432 = vpack.c.b16 %v413, %v412
        %v433 = vpack.c.b16 %v415, %v414
        %v434 = vpack.c.b16 %v417, %v416
        %v435 = vpack.c.b16 %v419, %v418
        %v440 = vunpack.c.l.b16 %v352
        %v441 = vunpack.c.l.b16 %v353
        %v442 = vunpack.c.l.b16 %v354
        %v443 = vunpack.c.l.b16 %v355
        %v444 = vpack.c.b16 %v441, %v440
        %v445 = vpack.c.b16 %v443, %v442
        %vm447 = vcmask 220160
        %v449 = vsel %vm447, %v420, 0
        %v452 = vsel %vm447, %v421, 0
        %v455 = vsel %vm447, %v422, 0
        %v458 = vsel %vm447, %v423, 0
        %v461 = vsel %vm447, %v424, 0
        %v464 = vsel %vm447, %v425, 0
        %v467 = vsel %vm447, %v426, 0
        %v470 = vsel %vm447, %v427, 0
        %v473 = vsel %vm447, %v428, 0
        %v476 = vsel %vm447, %v429, 0
        %v479 = vsel %vm447, %v430, 0
        %v482 = vsel %vm447, %v431, 0
        %v485 = vsel %vm447, %v432, 0
        %v488 = vsel %vm447, %v433, 0
        %v491 = vsel %vm447, %v434, 0
        %v494 = vsel %vm447, %v435, 0
        %vm496 = vcmask 1044480
        %vm497 = vcmask 1045504
        %v498 = vsel %vm496, 4294967295, 65535
        %v499 = vsel %vm497, %v498, 0
        %v501 = vand.u32 %v445, %v499
        %503 = vmatprep.subr.bf16.mxu0 0
        %504 = vmatpush1.bf16.msra.mxu0 %v444
        %505 = vmatprep.subr.bf16.mxu0 0
        %506 = vmatpush1.bf16.msra.mxu0 %v501
        %507 = vmatprep.subr.bf16.mxu0 0
        %508 = vmatpush1.bf16.msra.mxu0 0
        %509 = vmatprep.subr.bf16.mxu0 0
        %510 = vmatpush1.bf16.msra.mxu0 0
        %511 = vmatprep.subr.bf16.mxu0 0
        %512 = vmatpush1.bf16.msra.mxu0 0
        %513 = vmatprep.subr.bf16.mxu0 0
        %514 = vmatpush1.bf16.msra.mxu0 0
        %515 = vmatprep.subr.bf16.mxu0 0
        %516 = vmatpush1.bf16.msra.mxu0 0
        %517 = vmatprep.subr.bf16.mxu0 0
        %518 = vmatpush1.bf16.msra.mxu0 0
        %519 = vmatprep.subr.bf16.mxu0 0
        %520 = vmatpush1.bf16.msra.mxu0 0
        %521 = vmatprep.subr.bf16.mxu0 0
        %522 = vmatpush1.bf16.msra.mxu0 0
        %523 = vmatprep.subr.bf16.mxu0 0
        %524 = vmatpush1.bf16.msra.mxu0 0
        %525 = vmatprep.subr.bf16.mxu0 0
        %526 = vmatpush1.bf16.msra.mxu0 0
        %527 = vmatprep.subr.bf16.mxu0 0
        %528 = vmatpush1.bf16.msra.mxu0 0
        %529 = vmatprep.subr.bf16.mxu0 0
        %530 = vmatpush1.bf16.msra.mxu0 0
        %531 = vmatprep.subr.bf16.mxu0 0
        %532 = vmatpush1.bf16.msra.mxu0 0
        %533 = vmatprep.subr.bf16.mxu0 0
        %534 = vmatpush1.bf16.msra.mxu0 0
        %535 = vmatprep.mubr.bf16.mxu0 0
        %536 = vmatmul.mubr.bf16.gmra.mrb[0].mxu0 %v449
        %v537 = vpop.f32.mrb[0].mxu0
        %v538 = vadd.f32 0.0, %v537
        %v539 = vpop.f32.mrb[0].mxu0
        %v540 = vpop.f32.mrb[0].mxu0
        %v541 = vadd.f32 0.0, %v540
        %v542 = vpop.f32.mrb[0].mxu0
        %543 = vmatprep.mubr.bf16.mxu0 0
        %544 = vmatmul.mubr.bf16.gmra.mrb[0].mxu0 %v452
        %v545 = vpop.f32.mrb[0].mxu0
        %v546 = vadd.f32 0.0, %v545
        %v547 = vpop.f32.mrb[0].mxu0
        %v548 = vpop.f32.mrb[0].mxu0
        %v549 = vadd.f32 0.0, %v548
        %v550 = vpop.f32.mrb[0].mxu0
        %551 = vmatprep.mubr.bf16.mxu0 0
        %552 = vmatmul.mubr.bf16.gmra.mrb[0].mxu0 %v455
        %v553 = vpop.f32.mrb[0].mxu0
        %v554 = vadd.f32 0.0, %v553
        %v555 = vpop.f32.mrb[0].mxu0
        %v556 = vpop.f32.mrb[0].mxu0
        %v557 = vadd.f32 0.0, %v556
        %v558 = vpop.f32.mrb[0].mxu0
        %559 = vmatprep.mubr.bf16.mxu0 0
        %560 = vmatmul.mubr.bf16.gmra.mrb[0].mxu0 %v458
        %v561 = vpop.f32.mrb[0].mxu0
        %v562 = vadd.f32 0.0, %v561
        %v563 = vpop.f32.mrb[0].mxu0
        %v564 = vpop.f32.mrb[0].mxu0
        %v565 = vadd.f32 0.0, %v564
        %v566 = vpop.f32.mrb[0].mxu0
        %567 = vmatprep.mubr.bf16.mxu0 0
        %568 = vmatmul.mubr.bf16.gmra.mrb[0].mxu0 %v461
        %v569 = vpop.f32.mrb[0].mxu0
        %v570 = vadd.f32 0.0, %v569
        %v571 = vpop.f32.mrb[0].mxu0
        %v572 = vpop.f32.mrb[0].mxu0
        %v573 = vadd.f32 0.0, %v572
        %v574 = vpop.f32.mrb[0].mxu0
        %575 = vmatprep.mubr.bf16.mxu0 0
        %576 = vmatmul.mubr.bf16.gmra.mrb[0].mxu0 %v464
        %v577 = vpop.f32.mrb[0].mxu0
        %v578 = vadd.f32 0.0, %v577
        %v579 = vpop.f32.mrb[0].mxu0
        %v580 = vpop.f32.mrb[0].mxu0
        %v581 = vadd.f32 0.0, %v580
        %v582 = vpop.f32.mrb[0].mxu0
        %583 = vmatprep.mubr.bf16.mxu0 0
        %584 = vmatmul.mubr.bf16.gmra.mrb[0].mxu0 %v467
        %v585 = vpop.f32.mrb[0].mxu0
        %v586 = vadd.f32 0.0, %v585
        %v587 = vpop.f32.mrb[0].mxu0
        %v588 = vpop.f32.mrb[0].mxu0
        %v589 = vadd.f32 0.0, %v588
        %v590 = vpop.f32.mrb[0].mxu0
        %591 = vmatprep.mubr.bf16.mxu0 0
        %592 = vmatmul.mubr.bf16.gmra.mrb[0].mxu0 %v470
        %v593 = vpop.f32.mrb[0].mxu0
        %v594 = vadd.f32 0.0, %v593
        %v595 = vpop.f32.mrb[0].mxu0
        %v596 = vpop.f32.mrb[0].mxu0
        %v597 = vadd.f32 0.0, %v596
        %v598 = vpop.f32.mrb[0].mxu0
        %599 = vmatprep.mubr.bf16.mxu0 0
        %600 = vmatmul.mubr.bf16.gmra.mrb[0].mxu0 %v473
        %v601 = vpop.f32.mrb[0].mxu0
        %v602 = vadd.f32 0.0, %v601
        %v603 = vpop.f32.mrb[0].mxu0
        %v604 = vpop.f32.mrb[0].mxu0
        %v605 = vadd.f32 0.0, %v604
        %v606 = vpop.f32.mrb[0].mxu0
        %607 = vmatprep.mubr.bf16.mxu0 0
        %608 = vmatmul.mubr.bf16.gmra.mrb[0].mxu0 %v476
        %v609 = vpop.f32.mrb[0].mxu0
        %v610 = vadd.f32 0.0, %v609
        %v611 = vpop.f32.mrb[0].mxu0
        %v612 = vpop.f32.mrb[0].mxu0
        %v613 = vadd.f32 0.0, %v612
        %v614 = vpop.f32.mrb[0].mxu0
        %615 = vmatprep.mubr.bf16.mxu0 0
        %616 = vmatmul.mubr.bf16.gmra.mrb[0].mxu0 %v479
        %v617 = vpop.f32.mrb[0].mxu0
        %v618 = vadd.f32 0.0, %v617
        %v619 = vpop.f32.mrb[0].mxu0
        %v620 = vpop.f32.mrb[0].mxu0
        %v621 = vadd.f32 0.0, %v620
        %v622 = vpop.f32.mrb[0].mxu0
        %623 = vmatprep.mubr.bf16.mxu0 0
        %624 = vmatmul.mubr.bf16.gmra.mrb[0].mxu0 %v482
        %v625 = vpop.f32.mrb[0].mxu0
        %v626 = vadd.f32 0.0, %v625
        %v627 = vpop.f32.mrb[0].mxu0
        %v628 = vpop.f32.mrb[0].mxu0
        %v629 = vadd.f32 0.0, %v628
        %v630 = vpop.f32.mrb[0].mxu0
        %631 = vmatprep.mubr.bf16.mxu0 0
        %632 = vmatmul.mubr.bf16.gmra.mrb[0].mxu0 %v485
        %v633 = vpop.f32.mrb[0].mxu0
        %v634 = vadd.f32 0.0, %v633
        %v635 = vpop.f32.mrb[0].mxu0
        %v636 = vpop.f32.mrb[0].mxu0
        %v637 = vadd.f32 0.0, %v636
        %v638 = vpop.f32.mrb[0].mxu0
        %639 = vmatprep.mubr.bf16.mxu0 0
        %640 = vmatmul.mubr.bf16.gmra.mrb[0].mxu0 %v488
        %v641 = vpop.f32.mrb[0].mxu0
        %v642 = vadd.f32 0.0, %v641
        %v643 = vpop.f32.mrb[0].mxu0
        %v644 = vpop.f32.mrb[0].mxu0
        %v645 = vadd.f32 0.0, %v644
        %v646 = vpop.f32.mrb[0].mxu0
        %647 = vmatprep.mubr.bf16.mxu0 0
        %648 = vmatmul.mubr.bf16.gmra.mrb[0].mxu0 %v491
        %v649 = vpop.f32.mrb[0].mxu0
        %v650 = vadd.f32 0.0, %v649
        %v651 = vpop.f32.mrb[0].mxu0
        %v652 = vpop.f32.mrb[0].mxu0
        %v653 = vadd.f32 0.0, %v652
        %v654 = vpop.f32.mrb[0].mxu0
        %655 = vmatprep.mubr.bf16.mxu0 0
        %656 = vmatmul.mubr.bf16.gmra.mrb[0].mxu0 %v494
        %v657 = vpop.f32.mrb[0].mxu0
        %v658 = vadd.f32 0.0, %v657
        %v659 = vpop.f32.mrb[0].mxu0
        %v660 = vpop.f32.mrb[0].mxu0
        %v661 = vadd.f32 0.0, %v660
        %v662 = vpop.f32.mrb[0].mxu0
        %663 = vdwg.mxu0
        %v664 = vadd.f32 %v288, %v538
        %v665 = vadd.f32 %v289, %v541
        %v666 = vadd.f32 %v290, %v546
        %v667 = vadd.f32 %v291, %v549
        %v668 = vadd.f32 %v292, %v554
        %v669 = vadd.f32 %v293, %v557
        %v670 = vadd.f32 %v294, %v562
        %v671 = vadd.f32 %v295, %v565
        %v672 = vadd.f32 %v296, %v570
        %v673 = vadd.f32 %v297, %v573
        %v674 = vadd.f32 %v298, %v578
        %v675 = vadd.f32 %v299, %v581
        %v676 = vadd.f32 %v300, %v586
        %v677 = vadd.f32 %v301, %v589
        %v678 = vadd.f32 %v302, %v594
        %v679 = vadd.f32 %v303, %v597
        %v680 = vadd.f32 %v304, %v602
        %v681 = vadd.f32 %v305, %v605
        %v682 = vadd.f32 %v306, %v610
        %v683 = vadd.f32 %v307, %v613
        %v684 = vadd.f32 %v308, %v618
        %v685 = vadd.f32 %v309, %v621
        %v686 = vadd.f32 %v310, %v626
        %v687 = vadd.f32 %v311, %v629
        %v688 = vadd.f32 %v312, %v634
        %v689 = vadd.f32 %v313, %v637
        %v690 = vadd.f32 %v314, %v642
        %v691 = vadd.f32 %v315, %v645
        %v692 = vadd.f32 %v316, %v650
        %v693 = vadd.f32 %v317, %v653
        %v694 = vadd.f32 %v318, %v658
        %v695 = vadd.f32 %v319, %v661
        %696 = vst [vmem:[#allocation2] sm:$0xff] %v664
        %697 = vst [vmem:[#allocation2 + $0x8] sm:$0xff] %v665
        %698 = vst [vmem:[#allocation2 + $0x10] sm:$0xff] %v666
        %699 = vst [vmem:[#allocation2 + $0x18] sm:$0xff] %v667
        %700 = vst [vmem:[#allocation2 + $0x20] sm:$0xff] %v668
        %701 = vst [vmem:[#allocation2 + $0x28] sm:$0xff] %v669
        %702 = vst [vmem:[#allocation2 + $0x30] sm:$0xff] %v670
        %703 = vst [vmem:[#allocation2 + $0x38] sm:$0xff] %v671
        %704 = vst [vmem:[#allocation2 + $0x40] sm:$0xff] %v672
        %705 = vst [vmem:[#allocation2 + $0x48] sm:$0xff] %v673
        %706 = vst [vmem:[#allocation2 + $0x50] sm:$0xff] %v674
        %707 = vst [vmem:[#allocation2 + $0x58] sm:$0xff] %v675
        %708 = vst [vmem:[#allocation2 + $0x60] sm:$0xff] %v676
        %709 = vst [vmem:[#allocation2 + $0x68] sm:$0xff] %v677
        %710 = vst [vmem:[#allocation2 + $0x70] sm:$0xff] %v678
        %711 = vst [vmem:[#allocation2 + $0x78] sm:$0xff] %v679
        %712 = vst [vmem:[#allocation2 + $0x80] sm:$0xff] %v680
        %713 = vst [vmem:[#allocation2 + $0x88] sm:$0xff] %v681
        %714 = vst [vmem:[#allocation2 + $0x90] sm:$0xff] %v682
        %715 = vst [vmem:[#allocation2 + $0x98] sm:$0xff] %v683
        %716 = vst [vmem:[#allocation2 + $0xa0] sm:$0xff] %v684
        %717 = vst [vmem:[#allocation2 + $0xa8] sm:$0xff] %v685
        %718 = vst [vmem:[#allocation2 + $0xb0] sm:$0xff] %v686
        %719 = vst [vmem:[#allocation2 + $0xb8] sm:$0xff] %v687
        %720 = vst [vmem:[#allocation2 + $0xc0] sm:$0xff] %v688
        %721 = vst [vmem:[#allocation2 + $0xc8] sm:$0xff] %v689
        %722 = vst [vmem:[#allocation2 + $0xd0] sm:$0xff] %v690
        %723 = vst [vmem:[#allocation2 + $0xd8] sm:$0xff] %v691
        %724 = vst [vmem:[#allocation2 + $0xe0] sm:$0xff] %v692
        %725 = vst [vmem:[#allocation2 + $0xe8] sm:$0xff] %v693
        %726 = vst [vmem:[#allocation2 + $0xf0] sm:$0xff] %v694
        %727 = vst [vmem:[#allocation2 + $0xf8] sm:$0xff] %v695
        // Predicated region
        $region37: #{tpu_custom_call.1} parent=31 // pred_check
          %p728 = pneg %p252
        $region38: #{tpu_custom_call.1} parent=31 // pred_check_branch
          %730 = sbr.rel (%p728) target = $region40
        $region39: #{tpu_custom_call.1} parent=31 // pred_region
          %v731 = vld [vmem:[#allocation2] sm:$0xff]
          %v732 = vld [vmem:[#allocation2 + $0x8] sm:$0xff]
          %v733 = vld [vmem:[#allocation2 + $0x10] sm:$0xff]
          %v734 = vld [vmem:[#allocation2 + $0x18] sm:$0xff]
          %v735 = vld [vmem:[#allocation2 + $0x20] sm:$0xff]
          %v736 = vld [vmem:[#allocation2 + $0x28] sm:$0xff]
          %v737 = vld [vmem:[#allocation2 + $0x30] sm:$0xff]
          %v738 = vld [vmem:[#allocation2 + $0x38] sm:$0xff]
          %v739 = vld [vmem:[#allocation2 + $0x40] sm:$0xff]
          %v740 = vld [vmem:[#allocation2 + $0x48] sm:$0xff]
          %v741 = vld [vmem:[#allocation2 + $0x50] sm:$0xff]
          %v742 = vld [vmem:[#allocation2 + $0x58] sm:$0xff]
          %v743 = vld [vmem:[#allocation2 + $0x60] sm:$0xff]
          %v744 = vld [vmem:[#allocation2 + $0x68] sm:$0xff]
          %v745 = vld [vmem:[#allocation2 + $0x70] sm:$0xff]
          %v746 = vld [vmem:[#allocation2 + $0x78] sm:$0xff]
          %v747 = vld [vmem:[#allocation2 + $0x80] sm:$0xff]
          %v748 = vld [vmem:[#allocation2 + $0x88] sm:$0xff]
          %v749 = vld [vmem:[#allocation2 + $0x90] sm:$0xff]
          %v750 = vld [vmem:[#allocation2 + $0x98] sm:$0xff]
          %v751 = vld [vmem:[#allocation2 + $0xa0] sm:$0xff]
          %v752 = vld [vmem:[#allocation2 + $0xa8] sm:$0xff]
          %v753 = vld [vmem:[#allocation2 + $0xb0] sm:$0xff]
          %v754 = vld [vmem:[#allocation2 + $0xb8] sm:$0xff]
          %v755 = vld [vmem:[#allocation2 + $0xc0] sm:$0xff]
          %v756 = vld [vmem:[#allocation2 + $0xc8] sm:$0xff]
          %v757 = vld [vmem:[#allocation2 + $0xd0] sm:$0xff]
          %v758 = vld [vmem:[#allocation2 + $0xd8] sm:$0xff]
          %v759 = vld [vmem:[#allocation2 + $0xe0] sm:$0xff]
          %v760 = vld [vmem:[#allocation2 + $0xe8] sm:$0xff]
          %v761 = vld [vmem:[#allocation2 + $0xf0] sm:$0xff]
          %v762 = vld [vmem:[#allocation2 + $0xf8] sm:$0xff]
          %v763 = vld [vmem:[%s249] sm:$0x1]
          %v765 = vlaneseq
          %v766 = vshrl.u32 %v765, 7
          %v767 = vsub.s32 0, %v766
          %v768 = vrot.slane %v763, %v767
          %v770 = vadd.f32 %v731, %v768
          %v771 = vadd.f32 %v732, %v768
          %v772 = vadd.f32 %v733, %v768
          %v773 = vadd.f32 %v734, %v768
          %v774 = vadd.f32 %v735, %v768
          %v775 = vadd.f32 %v736, %v768
          %v776 = vadd.f32 %v737, %v768
          %v777 = vadd.f32 %v738, %v768
          %v778 = vadd.f32 %v739, %v768
          %v779 = vadd.f32 %v740, %v768
          %v780 = vadd.f32 %v741, %v768
          %v781 = vadd.f32 %v742, %v768
          %v782 = vadd.f32 %v743, %v768
          %v783 = vadd.f32 %v744, %v768
          %v784 = vadd.f32 %v745, %v768
          %v785 = vadd.f32 %v746, %v768
          %v786 = vadd.f32 %v747, %v768
          %v787 = vadd.f32 %v748, %v768
          %v788 = vadd.f32 %v749, %v768
          %v789 = vadd.f32 %v750, %v768
          %v790 = vadd.f32 %v751, %v768
          %v791 = vadd.f32 %v752, %v768
          %v792 = vadd.f32 %v753, %v768
          %v793 = vadd.f32 %v754, %v768
          %v794 = vadd.f32 %v755, %v768
          %v795 = vadd.f32 %v756, %v768
          %v796 = vadd.f32 %v757, %v768
          %v797 = vadd.f32 %v758, %v768
          %v798 = vadd.f32 %v759, %v768
          %v799 = vadd.f32 %v760, %v768
          %v800 = vadd.f32 %v761, %v768
          %v801 = vadd.f32 %v762, %v768
          %v802 = vmax.f32 %v770, 0.0
          %v803 = vmax.f32 %v771, 0.0
          %v804 = vmax.f32 %v772, 0.0
          %v805 = vmax.f32 %v773, 0.0
          %v806 = vmax.f32 %v774, 0.0
          %v807 = vmax.f32 %v775, 0.0
          %v808 = vmax.f32 %v776, 0.0
          %v809 = vmax.f32 %v777, 0.0
          %v810 = vmax.f32 %v778, 0.0
          %v811 = vmax.f32 %v779, 0.0
          %v812 = vmax.f32 %v780, 0.0
          %v813 = vmax.f32 %v781, 0.0
          %v814 = vmax.f32 %v782, 0.0
          %v815 = vmax.f32 %v783, 0.0
          %v816 = vmax.f32 %v784, 0.0
          %v817 = vmax.f32 %v785, 0.0
          %v818 = vmax.f32 %v786, 0.0
          %v819 = vmax.f32 %v787, 0.0
          %v820 = vmax.f32 %v788, 0.0
          %v821 = vmax.f32 %v789, 0.0
          %v822 = vmax.f32 %v790, 0.0
          %v823 = vmax.f32 %v791, 0.0
          %v824 = vmax.f32 %v792, 0.0
          %v825 = vmax.f32 %v793, 0.0
          %v826 = vmax.f32 %v794, 0.0
          %v827 = vmax.f32 %v795, 0.0
          %v828 = vmax.f32 %v796, 0.0
          %v829 = vmax.f32 %v797, 0.0
          %v830 = vmax.f32 %v798, 0.0
          %v831 = vmax.f32 %v799, 0.0
          %v832 = vmax.f32 %v800, 0.0
          %v833 = vmax.f32 %v801, 0.0
          %v834 = vpack.c.bf16 %v803, %v802
          %v835 = vpack.c.bf16 %v805, %v804
          %v836 = vpack.c.bf16 %v807, %v806
          %v837 = vpack.c.bf16 %v809, %v808
          %v838 = vpack.c.bf16 %v811, %v810
          %v839 = vpack.c.bf16 %v813, %v812
          %v840 = vpack.c.bf16 %v815, %v814
          %v841 = vpack.c.bf16 %v817, %v816
          %v842 = vpack.c.bf16 %v819, %v818
          %v843 = vpack.c.bf16 %v821, %v820
          %v844 = vpack.c.bf16 %v823, %v822
          %v845 = vpack.c.bf16 %v825, %v824
          %v846 = vpack.c.bf16 %v827, %v826
          %v847 = vpack.c.bf16 %v829, %v828
          %v848 = vpack.c.bf16 %v831, %v830
          %v849 = vpack.c.bf16 %v833, %v832
          %v866 = vunpack.c.l.b16 %v834
          %v867 = vunpack.c.h.b16 %v834
          %v868 = vunpack.c.l.b16 %v835
          %v869 = vunpack.c.h.b16 %v835
          %v870 = vunpack.c.l.b16 %v836
          %v871 = vunpack.c.h.b16 %v836
          %v872 = vunpack.c.l.b16 %v837
          %v873 = vunpack.c.h.b16 %v837
          %v874 = vunpack.c.l.b16 %v838
          %v875 = vunpack.c.h.b16 %v838
          %v876 = vunpack.c.l.b16 %v839
          %v877 = vunpack.c.h.b16 %v839
          %v878 = vunpack.c.l.b16 %v840
          %v879 = vunpack.c.h.b16 %v840
          %v880 = vunpack.c.l.b16 %v841
          %v881 = vunpack.c.h.b16 %v841
          %v882 = vunpack.c.l.b16 %v842
          %v883 = vunpack.c.h.b16 %v842
          %v884 = vunpack.c.l.b16 %v843
          %v885 = vunpack.c.h.b16 %v843
          %v886 = vunpack.c.l.b16 %v844
          %v887 = vunpack.c.h.b16 %v844
          %v888 = vunpack.c.l.b16 %v845
          %v889 = vunpack.c.h.b16 %v845
          %v890 = vunpack.c.l.b16 %v846
          %v891 = vunpack.c.h.b16 %v846
          %v892 = vunpack.c.l.b16 %v847
          %v893 = vunpack.c.h.b16 %v847
          %v894 = vunpack.c.l.b16 %v848
          %v895 = vunpack.c.h.b16 %v848
          %v896 = vunpack.c.l.b16 %v849
          %v897 = vunpack.c.h.b16 %v849
          %v898 = vpack.c.b16 %v866, %v866
          %v899 = vpack.c.b16 %v867, %v867
          %v900 = vpack.c.b16 %v868, %v868
          %v901 = vpack.c.b16 %v869, %v869
          %v902 = vpack.c.b16 %v870, %v870
          %v903 = vpack.c.b16 %v871, %v871
          %v904 = vpack.c.b16 %v872, %v872
          %v905 = vpack.c.b16 %v873, %v873
          %v906 = vpack.c.b16 %v874, %v874
          %v907 = vpack.c.b16 %v875, %v875
          %v908 = vpack.c.b16 %v876, %v876
          %v909 = vpack.c.b16 %v877, %v877
          %v910 = vpack.c.b16 %v878, %v878
          %v911 = vpack.c.b16 %v879, %v879
          %v912 = vpack.c.b16 %v880, %v880
          %v913 = vpack.c.b16 %v881, %v881
          %v914 = vpack.c.b16 %v882, %v882
          %v915 = vpack.c.b16 %v883, %v883
          %v916 = vpack.c.b16 %v884, %v884
          %v917 = vpack.c.b16 %v885, %v885
          %v918 = vpack.c.b16 %v886, %v886
          %v919 = vpack.c.b16 %v887, %v887
          %v920 = vpack.c.b16 %v888, %v888
          %v921 = vpack.c.b16 %v889, %v889
          %v922 = vpack.c.b16 %v890, %v890
          %v923 = vpack.c.b16 %v891, %v891
          %v924 = vpack.c.b16 %v892, %v892
          %v925 = vpack.c.b16 %v893, %v893
          %v926 = vpack.c.b16 %v894, %v894
          %v927 = vpack.c.b16 %v895, %v895
          %v928 = vpack.c.b16 %v896, %v896
          %v929 = vpack.c.b16 %v897, %v897
          %962 = vst [vmem:[%s228] sm:$0xf] %v898
          %963 = vst [vmem:[%s228 + $0x4] sm:$0xf] %v899
          %964 = vst [vmem:[%s228 + $0x8] sm:$0xf] %v900
          %965 = vst [vmem:[%s228 + $0xc] sm:$0xf] %v901
          %966 = vst [vmem:[%s228 + $0x10] sm:$0xf] %v902
          %967 = vst [vmem:[%s228 + $0x14] sm:$0xf] %v903
          %968 = vst [vmem:[%s228 + $0x18] sm:$0xf] %v904
          %969 = vst [vmem:[%s228 + $0x1c] sm:$0xf] %v905
          %970 = vst [vmem:[%s228 + $0x20] sm:$0xf] %v906
          %971 = vst [vmem:[%s228 + $0x24] sm:$0xf] %v907
          %972 = vst [vmem:[%s228 + $0x28] sm:$0xf] %v908
          %973 = vst [vmem:[%s228 + $0x2c] sm:$0xf] %v909
          %974 = vst [vmem:[%s228 + $0x30] sm:$0xf] %v910
          %975 = vst [vmem:[%s228 + $0x34] sm:$0xf] %v911
          %976 = vst [vmem:[%s228 + $0x38] sm:$0xf] %v912
          %977 = vst [vmem:[%s228 + $0x3c] sm:$0xf] %v913
          %978 = vst [vmem:[%s228 + $0x40] sm:$0xf] %v914
          %979 = vst [vmem:[%s228 + $0x44] sm:$0xf] %v915
          %980 = vst [vmem:[%s228 + $0x48] sm:$0xf] %v916
          %981 = vst [vmem:[%s228 + $0x4c] sm:$0xf] %v917
          %982 = vst [vmem:[%s228 + $0x50] sm:$0xf] %v918
          %983 = vst [vmem:[%s228 + $0x54] sm:$0xf] %v919
          %984 = vst [vmem:[%s228 + $0x58] sm:$0xf] %v920
          %985 = vst [vmem:[%s228 + $0x5c] sm:$0xf] %v921
          %986 = vst [vmem:[%s228 + $0x60] sm:$0xf] %v922
          %987 = vst [vmem:[%s228 + $0x64] sm:$0xf] %v923
          %988 = vst [vmem:[%s228 + $0x68] sm:$0xf] %v924
          %989 = vst [vmem:[%s228 + $0x6c] sm:$0xf] %v925
          %990 = vst [vmem:[%s228 + $0x70] sm:$0xf] %v926
          %991 = vst [vmem:[%s228 + $0x74] sm:$0xf] %v927
          %992 = vst [vmem:[%s228 + $0x78] sm:$0xf] %v928
          %993 = vst [vmem:[%s228 + $0x7c] sm:$0xf] %v929
        $region40: #{tpu_custom_call.1} parent=31 // pred_fallthru
          _
        %s994 = sand.u32 %s128, 1
        %s995 = scalar_lea.sflag [#allocation4], %s994
        %s996 = sand.u32 %s128, 1
        %s997 = smul.addr %s996, 128
        %s998 = scalar_lea.vmem [#allocation3], %s997
        // Predicated region
        $region41: #{tpu_custom_call.1} parent=31 // pred_check
          %p999 = pneg %p138
        $region42: #{tpu_custom_call.1} parent=31 // pred_check_branch
          %1001 = sbr.rel (%p999) target = $region44
        $region43: #{tpu_custom_call.1} parent=31 // pred_region
          %s1002 = smul.u32 32, %s22
          %s1004 = ssub.s32 2048, 2048
          %1005 = vsyncadd %s995, %s1004
          %s1006 = sadd.s32 %s23, %s1002
          %s1007 = smul.addr %s1006, 64
          %s1008 = scalar_lea.hbm %s3, %s1007
          %s1009 = sshll.u32 %s998, 4
          %s1010 = int_to_ptr.vmem [resolvable:$true] %s1009
          %1015 = dma.vmem_to_hbm [thread:$0]  %s1010, 2048, %s1008, %s995, 64, 64, 4
        $region44: #{tpu_custom_call.1} parent=31 // pred_fallthru
          _
      $region32: #{tpu_custom_call.1} parent=5 // pred_fallthru
        _
      %p1016 = scmp.le.s32.totalorder 2, %s12
      // Predicated region
      $region45: #{tpu_custom_call.1} parent=5 // pred_check
        %p1017 = pneg %p1016
      $region46: #{tpu_custom_call.1} parent=5 // pred_check_branch
        %1019 = sbr.rel (%p1017) target = $region48
      $region47: #{tpu_custom_call.1} parent=5 // pred_region
        %s1020 = ssub.s32 %s12, 2
        // Predicated region
        $region49: #{tpu_custom_call.1} parent=47 // pred_check
          %p1021 = pneg %p144
        $region50: #{tpu_custom_call.1} parent=47 // pred_check_branch
          %1023 = sbr.rel (%p1021) target = $region52
        $region51: #{tpu_custom_call.1} parent=47 // pred_region
          %s1024 = sand.u32 %s129, 1
          %s1025 = scalar_lea.sflag [#allocation4], %s1024
          %s1026 = sand.u32 %s129, 1
          %s1027 = smul.addr %s1026, 128
          %s1028 = scalar_lea.vmem [#allocation3], %s1027
          %1029 = dma.done %s1025, 2048
        $region52: #{tpu_custom_call.1} parent=47 // pred_fallthru
          _
      $region48: #{tpu_custom_call.1} parent=5 // pred_fallthru
        _
    $region6: #{tpu_custom_call.1} parent=1 // loop_footer
      %s16 = sadd.s32 1, %s12
    $region7: #{tpu_custom_call.1} parent=1 // loop_footer_branch
      %11 = sbr.rel target = $region3
    $region8: #{tpu_custom_call.1} parent=1 // loop_exit
      _
    %1030 = vsyncpa [#allocation4], 1
    %s1031 = scalar_lea.sflag [#allocation4], 1
    %1032 = vsyncpa %s1031, 1

</llo_original>
